<compile_context>
chip_gen: v5e
topology: v5e:2x2
jax: 0.10.0
libtpu: 0.0.40
codegen_flags: <defaults>
</compile_context>

<pallas_src>
import functools

import jax
import jax.numpy as jnp
from jax.experimental import pallas as pl
from jax.experimental.pallas import tpu as pltpu


# ----------------------------------------------------------------------------
# Kernel 1: fused NeXtVLAD descriptor (everything up to, but excluding, fc).
# ----------------------------------------------------------------------------
def _nextvlad_desc_kernel(x_ref, we_ref, be_ref, wg_ref, bg_ref, wc_ref, cw_ref,
                          o_ref, *, groups, cluster, new_feat):
    # x_ref : (1, M, F)      one batch element of frame features
    # we_ref: (F, EF)        expansion_linear weight (in, out)
    # be_ref: (1, EF)        expansion_linear bias
    # wg_ref: (EF, G)        group_attention weight
    # bg_ref: (1, G)         group_attention bias
    # wc_ref: (EF, G*C)      cluster_linear weight (no bias)
    # cw_ref: (NF, C)        cluster_weight
    # o_ref : (1, NF, C)     normalized VLAD descriptor for this batch element
    G, C, NF = groups, cluster, new_feat

    x = x_ref[0]                                                       # (M, F)

    # expansion_linear -> (M, EF), f32 accumulation on the MXU
    expanded = jnp.dot(x, we_ref[...],
                       preferred_element_type=jnp.float32) + be_ref[...]

    # group attention -> (M, G)
    attn = jax.nn.sigmoid(
        jnp.dot(expanded, wg_ref[...],
                preferred_element_type=jnp.float32) + bg_ref[...])

    # cluster logits -> (M, G*C); column g*C + c corresponds to slot (m*G+g, c)
    logits = jnp.dot(expanded, wc_ref[...],
                     preferred_element_type=jnp.float32)

    vlad = jnp.zeros((NF, C), jnp.float32)
    a_sum = jnp.zeros((1, C), jnp.float32)

    # Static loop over groups: static lane slices, no in-kernel reshapes.
    for g in range(G):
        lg = logits[:, g * C:(g + 1) * C]                              # (M, C)
        lg = lg - jnp.max(lg, axis=-1, keepdims=True)
        eg = jnp.exp(lg)
        pg = eg / jnp.sum(eg, axis=-1, keepdims=True)                  # softmax
        wgt = pg * attn[:, g:g + 1]                                    # (M, C)

        a_sum = a_sum + jnp.sum(wgt, axis=0, keepdims=True)            # (1, C)

        xg = expanded[:, g * NF:(g + 1) * NF]                          # (M, NF)
        # vlad[n, c] += sum_m xg[m, n] * wgt[m, c]
        vlad = vlad + jnp.dot(xg.T, wgt,
                              preferred_element_type=jnp.float32)      # (NF, C)

    a = a_sum * cw_ref[...]                                            # (NF, C)
    v = vlad - a
    # F.normalize(..., p=2, dim=1): normalize over the NF axis, eps clamp 1e-12.
    norm = jnp.sqrt(jnp.sum(v * v, axis=0, keepdims=True))             # (1, C)
    o_ref[0] = v / jnp.maximum(norm, 1e-12)


# ----------------------------------------------------------------------------
# Kernel 2: fc = tiled matmul with bias, accumulating into the resident output.
# ----------------------------------------------------------------------------
def _fc_kernel(x_ref, w_ref, b_ref, o_ref):
    # x_ref: (B, tk)   w_ref: (tk, O)   b_ref: (1, O)   o_ref: (B, O) (resident)
    k = pl.program_id(0)

    @pl.when(k == 0)
    def _():
        o_ref[...] = jnp.zeros_like(o_ref)

    o_ref[...] += jnp.dot(x_ref[...], w_ref[...],
                          preferred_element_type=jnp.float32)

    @pl.when(k == pl.num_programs(0) - 1)
    def _():
        o_ref[...] += b_ref[...]


# ----------------------------------------------------------------------------
# Host wrapper
# ----------------------------------------------------------------------------
def nextvlad_forward(inputs, mask, params, *, groups, cluster_size, expansion,
                     vmem_limit_bytes=48 * 1024 * 1024):
    """inputs: (B, M, F) float32.  mask kept for signature parity (unused, as in
    the PyTorch forward).  Weights are in (in, out) orientation (i.e. the
    transpose of torch.nn.Linear.weight)."""
    del mask  # unused by the original PyTorch forward as well
    B, M, F = inputs.shape
    EF = expansion * F
    assert EF % groups == 0
    NF = EF // groups
    C = cluster_size

    w_exp = params["w_exp"].reshape(F, EF).astype(jnp.float32)
    b_exp = params["b_exp"].reshape(1, EF).astype(jnp.float32)
    w_grp = params["w_grp"].reshape(EF, groups).astype(jnp.float32)
    b_grp = params["b_grp"].reshape(1, groups).astype(jnp.float32)
    w_clu = params["w_clu"].reshape(EF, groups * C).astype(jnp.float32)
    cw = params["cluster_weight"].reshape(NF, C).astype(jnp.float32)
    w_fc = params["w_fc"].astype(jnp.float32)
    w_fc = w_fc.reshape(NF * C, -1)
    b_fc = params["b_fc"].reshape(1, -1).astype(jnp.float32)
    O = w_fc.shape[1]

    desc_kernel = functools.partial(
        _nextvlad_desc_kernel, groups=groups, cluster=C, new_feat=NF)

    vlad = pl.pallas_call(
        desc_kernel,
        out_shape=jax.ShapeDtypeStruct((B, NF, C), jnp.float32),
        grid=(B,),
        in_specs=[
            pl.BlockSpec((1, M, F), lambda b: (b, 0, 0)),        # frame features
            pl.BlockSpec((F, EF), lambda b: (0, 0)),             # expansion W
            pl.BlockSpec((1, EF), lambda b: (0, 0)),             # expansion b
            pl.BlockSpec((EF, groups), lambda b: (0, 0)),        # group-attn W
            pl.BlockSpec((1, groups), lambda b: (0, 0)),         # group-attn b
            pl.BlockSpec((EF, groups * C), lambda b: (0, 0)),    # cluster W
            pl.BlockSpec((NF, C), lambda b: (0, 0)),             # cluster_weight
        ],
        out_specs=pl.BlockSpec((1, NF, C), lambda b: (b, 0, 0)),
        compiler_params=pltpu.CompilerParams(
            dimension_semantics=("parallel",),
            vmem_limit_bytes=vmem_limit_bytes),
    )(inputs.astype(jnp.float32), w_exp, b_exp, w_grp, b_grp, w_clu, cw)

    # TODO(synk): dropout is inference-mode identity (training-mode RNG dropout
    # is not implemented in the kernel).

    # Row-major flatten (B, NF, C) -> (B, NF*C) matches the torch reshape of the
    # contiguous (B, NF, C) tensor.
    vlad_flat = vlad.reshape(B, NF * C)

    K = NF * C
    # Lane-dense K tile whenever K allows it; otherwise take the full dim.
    if K % 512 == 0:
        tk = 512
    elif K % 128 == 0:
        tk = 128
    else:
        tk = K

    out = pl.pallas_call(
        _fc_kernel,
        out_shape=jax.ShapeDtypeStruct((B, O), jnp.float32),
        grid=(K // tk,),
        in_specs=[
            pl.BlockSpec((B, tk), lambda k: (0, k)),
            pl.BlockSpec((tk, O), lambda k: (k, 0)),
            pl.BlockSpec((1, O), lambda k: (0, 0)),
        ],
        out_specs=pl.BlockSpec((B, O), lambda k: (0, 0)),
        compiler_params=pltpu.CompilerParams(
            dimension_semantics=("arbitrary",),
            vmem_limit_bytes=vmem_limit_bytes),
    )(vlad_flat, w_fc, b_fc)
    return out


# ----------------------------------------------------------------------------
# Plain-JAX reference (mirror of the PyTorch forward, eval mode)
# ----------------------------------------------------------------------------
def nextvlad_reference(x, p, *, groups, cluster_size, expansion):
    B, M, F = x.shape
    G, C, E = groups, cluster_size, expansion
    EF = E * F
    NF = EF // G

    inputs = x @ p["w_exp"].reshape(F, EF) + p["b_exp"].reshape(EF)      # (B,M,EF)
    attention = jax.nn.sigmoid(inputs @ p["w_grp"] + p["b_grp"])         # (B,M,G)
    attention = attention.reshape(B, M * G, 1)
    reshaped_input = inputs.reshape(-1, EF)
    activation = (reshaped_input @ p["w_clu"]).reshape(B, M * G, C)
    activation = jax.nn.softmax(activation, axis=-1)
    activation = activation * attention
    a_sum = jnp.sum(activation, axis=-2, keepdims=True)                  # (B,1,C)
    a = a_sum * p["cluster_weight"].reshape(1, NF, C)                    # (B,NF,C)
    activation = jnp.transpose(activation, (0, 2, 1))                    # (B,C,M*G)
    reshaped_input = inputs.reshape(B, M * G, NF)
    vlad = jnp.matmul(activation, reshaped_input)                        # (B,C,NF)
    vlad = jnp.transpose(vlad, (0, 2, 1)) - a                            # (B,NF,C)
    norm = jnp.sqrt(jnp.sum(vlad * vlad, axis=1, keepdims=True))
    vlad = vlad / jnp.maximum(norm, 1e-12)
    vlad = vlad.reshape(B, NF * C)
    return vlad @ p["w_fc"].reshape(NF * C, -1) + p["b_fc"].reshape(-1)


if __name__ == "__main__":
    # Small demo shapes consistent with the module.
    B, M, F = 2, 8, 32          # batch, frames, feature_size
    C, E, G, O = 8, 2, 4, 32    # cluster_size, expansion, groups, output_size
    EF = E * F                  # 64
    NF = EF // G                # 16

    key = jax.random.PRNGKey(0)
    ks = jax.random.split(key, 10)

    def lin_init(k, fan_in, shape):
        bound = 1.0 / (fan_in ** 0.5)
        return jax.random.uniform(k, shape, jnp.float32, -bound, bound)

    x = jax.random.normal(ks[0], (B, M, F), dtype=jnp.float32)
    mask = jnp.ones((B, M), dtype=jnp.float32)  # unused (parity with torch API)

    # Weights in (in, out) orientation (transpose of torch Linear.weight).
    params = dict(
        w_exp=lin_init(ks[1], F, (F, EF)),
        b_exp=lin_init(ks[2], F, (EF,)),
        w_grp=lin_init(ks[3], EF, (EF, G)),
        b_grp=lin_init(ks[4], EF, (G,)),
        w_clu=lin_init(ks[5], EF, (EF, G * C)),
        cluster_weight=0.01 * jax.random.normal(ks[6], (1, NF, C), jnp.float32),
        w_fc=lin_init(ks[7], NF * C, (NF * C, O)),
        b_fc=lin_init(ks[8], NF * C, (O,)),
    )

    out = nextvlad_forward(x, mask, params,
                           groups=G, cluster_size=C, expansion=E)
    out = jax.block_until_ready(out)

    ref = nextvlad_reference(x, params, groups=G, cluster_size=C, expansion=E)

    assert out.shape == (B, O)
    assert jnp.allclose(out, ref, atol=1e-4, rtol=1e-4), (
        float(jnp.max(jnp.abs(out - ref))))

    print("KERNEL_OK")
</pallas_src>

<mosaic_0001>
module attributes {stable_mosaic.version = 11 : i64} {
  func.func @_nextvlad_desc_kernel(%arg0: i32, %arg1: memref<1x8x32xf32, #tpu.memory_space<vmem>>, %arg2: memref<32x64xf32, #tpu.memory_space<vmem>>, %arg3: memref<1x64xf32, #tpu.memory_space<vmem>>, %arg4: memref<64x4xf32, #tpu.memory_space<vmem>>, %arg5: memref<1x4xf32, #tpu.memory_space<vmem>>, %arg6: memref<64x32xf32, #tpu.memory_space<vmem>>, %arg7: memref<16x8xf32, #tpu.memory_space<vmem>>, %arg8: memref<1x16x8xf32, #tpu.memory_space<vmem>>) attributes {dimension_semantics = [#tpu.dimension_semantics<parallel>], iteration_bounds = array<i64: 2>, scalar_prefetch = 0 : i64, scratch_operands = 0 : i64, tpu.core_type = #tpu.core_type<tc>, window_params = [{transform_indices = @transform_0, window_bounds = array<i64: 1, 8, 32>}, {pipeline_mode = #tpu.pipeline_mode<synchronous>, transform_indices = @transform_1, window_bounds = array<i64: 32, 64>}, {pipeline_mode = #tpu.pipeline_mode<synchronous>, transform_indices = @transform_2, window_bounds = array<i64: 1, 64>}, {pipeline_mode = #tpu.pipeline_mode<synchronous>, transform_indices = @transform_3, window_bounds = array<i64: 64, 4>}, {pipeline_mode = #tpu.pipeline_mode<synchronous>, transform_indices = @transform_4, window_bounds = array<i64: 1, 4>}, {pipeline_mode = #tpu.pipeline_mode<synchronous>, transform_indices = @transform_5, window_bounds = array<i64: 64, 32>}, {pipeline_mode = #tpu.pipeline_mode<synchronous>, transform_indices = @transform_6, window_bounds = array<i64: 16, 8>}, {transform_indices = @transform_7, window_bounds = array<i64: 1, 16, 8>}]} {
    %c0 = arith.constant 0 : index
    %c0_0 = arith.constant 0 : index
    %c0_1 = arith.constant 0 : index
    %0 = vector.load %arg1[%c0, %c0_0, %c0_1] : memref<1x8x32xf32, #tpu.memory_space<vmem>>, vector<1x8x32xf32>
    %1 = vector.shape_cast %0 : vector<1x8x32xf32> to vector<8x32xf32>
    %c0_2 = arith.constant 0 : index
    %c0_3 = arith.constant 0 : index
    %2 = vector.load %arg2[%c0_2, %c0_3] : memref<32x64xf32, #tpu.memory_space<vmem>>, vector<32x64xf32>
    %cst = arith.constant dense<0.000000e+00> : vector<8x64xf32>
    %3 = tpu.matmul %1, %2, %cst {dimension_numbers = #tpu.dot_dimension_numbers<[1], [0], [0], [1], [0, 0, 1, 1], [], []>} : vector<8x32xf32>, vector<32x64xf32>, vector<8x64xf32> -> vector<8x64xf32>
    %c0_4 = arith.constant 0 : index
    %c0_5 = arith.constant 0 : index
    %4 = vector.load %arg3[%c0_4, %c0_5] : memref<1x64xf32, #tpu.memory_space<vmem>>, vector<1x64xf32>
    %5 = vector.broadcast %4 : vector<1x64xf32> to vector<8x64xf32>
    %6 = arith.addf %3, %5 : vector<8x64xf32>
    %c0_6 = arith.constant 0 : index
    %c0_7 = arith.constant 0 : index
    %7 = vector.load %arg4[%c0_6, %c0_7] : memref<64x4xf32, #tpu.memory_space<vmem>>, vector<64x4xf32>
    %cst_8 = arith.constant dense<0.000000e+00> : vector<8x4xf32>
    %8 = tpu.matmul %6, %7, %cst_8 {dimension_numbers = #tpu.dot_dimension_numbers<[1], [0], [0], [1], [0, 0, 1, 1], [], []>} : vector<8x64xf32>, vector<64x4xf32>, vector<8x4xf32> -> vector<8x4xf32>
    %c0_9 = arith.constant 0 : index
    %c0_10 = arith.constant 0 : index
    %9 = vector.load %arg5[%c0_9, %c0_10] : memref<1x4xf32, #tpu.memory_space<vmem>>, vector<1x4xf32>
    %10 = vector.broadcast %9 : vector<1x4xf32> to vector<8x4xf32>
    %11 = arith.addf %8, %10 : vector<8x4xf32>
    %12 = arith.negf %11 : vector<8x4xf32>
    %13 = math.exp %12 : vector<8x4xf32>
    %cst_11 = arith.constant 1.000000e+00 : f32
    %14 = vector.broadcast %cst_11 : f32 to vector<8x4xf32>
    %15 = arith.addf %14, %13 : vector<8x4xf32>
    %16 = arith.divf %14, %15 : vector<8x4xf32>
    %c0_12 = arith.constant 0 : index
    %c0_13 = arith.constant 0 : index
    %17 = vector.load %arg6[%c0_12, %c0_13] : memref<64x32xf32, #tpu.memory_space<vmem>>, vector<64x32xf32>
    %cst_14 = arith.constant dense<0.000000e+00> : vector<8x32xf32>
    %18 = tpu.matmul %6, %17, %cst_14 {dimension_numbers = #tpu.dot_dimension_numbers<[1], [0], [0], [1], [0, 0, 1, 1], [], []>} : vector<8x64xf32>, vector<64x32xf32>, vector<8x32xf32> -> vector<8x32xf32>
    %cst_15 = arith.constant 0.000000e+00 : f32
    %19 = vector.broadcast %cst_15 : f32 to vector<16x8xf32>
    %cst_16 = arith.constant 0.000000e+00 : f32
    %20 = vector.broadcast %cst_16 : f32 to vector<1x8xf32>
    %21 = vector.extract_strided_slice %18 {offsets = [0, 0], sizes = [8, 8], strides = [1, 1]} : vector<8x32xf32> to vector<8x8xf32>
    %cst_17 = arith.constant dense<0xFF800000> : vector<8xf32>
    %22 = vector.multi_reduction <maximumf>, %21, %cst_17 [1] : vector<8x8xf32> to vector<8xf32>
    %23 = vector.shape_cast %22 : vector<8xf32> to vector<8x1xf32>
    %24 = vector.broadcast %23 : vector<8x1xf32> to vector<8x8xf32>
    %25 = arith.subf %21, %24 : vector<8x8xf32>
    %26 = math.exp %25 : vector<8x8xf32>
    %cst_18 = arith.constant dense<0.000000e+00> : vector<8xf32>
    %27 = vector.multi_reduction <add>, %26, %cst_18 [1] : vector<8x8xf32> to vector<8xf32>
    %28 = vector.shape_cast %27 : vector<8xf32> to vector<8x1xf32>
    %29 = vector.broadcast %28 : vector<8x1xf32> to vector<8x8xf32>
    %30 = arith.divf %26, %29 : vector<8x8xf32>
    %31 = vector.extract_strided_slice %16 {offsets = [0, 0], sizes = [8, 1], strides = [1, 1]} : vector<8x4xf32> to vector<8x1xf32>
    %32 = vector.broadcast %31 : vector<8x1xf32> to vector<8x8xf32>
    %33 = arith.mulf %30, %32 : vector<8x8xf32>
    %cst_19 = arith.constant dense<0.000000e+00> : vector<8xf32>
    %34 = vector.multi_reduction <add>, %33, %cst_19 [0] : vector<8x8xf32> to vector<8xf32>
    %35 = vector.shape_cast %34 : vector<8xf32> to vector<1x8xf32>
    %36 = arith.addf %20, %35 : vector<1x8xf32>
    %37 = vector.extract_strided_slice %6 {offsets = [0, 0], sizes = [8, 16], strides = [1, 1]} : vector<8x64xf32> to vector<8x16xf32>
    %38 = tpu.transpose %37, [1, 0] : vector<8x16xf32> -> vector<16x8xf32>
    %cst_20 = arith.constant dense<0.000000e+00> : vector<16x8xf32>
    %39 = tpu.matmul %38, %33, %cst_20 {dimension_numbers = #tpu.dot_dimension_numbers<[1], [0], [0], [1], [0, 0, 1, 1], [], []>} : vector<16x8xf32>, vector<8x8xf32>, vector<16x8xf32> -> vector<16x8xf32>
    %40 = arith.addf %19, %39 : vector<16x8xf32>
    %41 = vector.extract_strided_slice %18 {offsets = [0, 8], sizes = [8, 8], strides = [1, 1]} : vector<8x32xf32> to vector<8x8xf32>
    %cst_21 = arith.constant dense<0xFF800000> : vector<8xf32>
    %42 = vector.multi_reduction <maximumf>, %41, %cst_21 [1] : vector<8x8xf32> to vector<8xf32>
    %43 = vector.shape_cast %42 : vector<8xf32> to vector<8x1xf32>
    %44 = vector.broadcast %43 : vector<8x1xf32> to vector<8x8xf32>
    %45 = arith.subf %41, %44 : vector<8x8xf32>
    %46 = math.exp %45 : vector<8x8xf32>
    %cst_22 = arith.constant dense<0.000000e+00> : vector<8xf32>
    %47 = vector.multi_reduction <add>, %46, %cst_22 [1] : vector<8x8xf32> to vector<8xf32>
    %48 = vector.shape_cast %47 : vector<8xf32> to vector<8x1xf32>
    %49 = vector.broadcast %48 : vector<8x1xf32> to vector<8x8xf32>
    %50 = arith.divf %46, %49 : vector<8x8xf32>
    %51 = vector.extract_strided_slice %16 {offsets = [0, 1], sizes = [8, 1], strides = [1, 1]} : vector<8x4xf32> to vector<8x1xf32>
    %52 = vector.broadcast %51 : vector<8x1xf32> to vector<8x8xf32>
    %53 = arith.mulf %50, %52 : vector<8x8xf32>
    %cst_23 = arith.constant dense<0.000000e+00> : vector<8xf32>
    %54 = vector.multi_reduction <add>, %53, %cst_23 [0] : vector<8x8xf32> to vector<8xf32>
    %55 = vector.shape_cast %54 : vector<8xf32> to vector<1x8xf32>
    %56 = arith.addf %36, %55 : vector<1x8xf32>
    %57 = vector.extract_strided_slice %6 {offsets = [0, 16], sizes = [8, 16], strides = [1, 1]} : vector<8x64xf32> to vector<8x16xf32>
    %58 = tpu.transpose %57, [1, 0] : vector<8x16xf32> -> vector<16x8xf32>
    %cst_24 = arith.constant dense<0.000000e+00> : vector<16x8xf32>
    %59 = tpu.matmul %58, %53, %cst_24 {dimension_numbers = #tpu.dot_dimension_numbers<[1], [0], [0], [1], [0, 0, 1, 1], [], []>} : vector<16x8xf32>, vector<8x8xf32>, vector<16x8xf32> -> vector<16x8xf32>
    %60 = arith.addf %40, %59 : vector<16x8xf32>
    %61 = vector.extract_strided_slice %18 {offsets = [0, 16], sizes = [8, 8], strides = [1, 1]} : vector<8x32xf32> to vector<8x8xf32>
    %cst_25 = arith.constant dense<0xFF800000> : vector<8xf32>
    %62 = vector.multi_reduction <maximumf>, %61, %cst_25 [1] : vector<8x8xf32> to vector<8xf32>
    %63 = vector.shape_cast %62 : vector<8xf32> to vector<8x1xf32>
    %64 = vector.broadcast %63 : vector<8x1xf32> to vector<8x8xf32>
    %65 = arith.subf %61, %64 : vector<8x8xf32>
    %66 = math.exp %65 : vector<8x8xf32>
    %cst_26 = arith.constant dense<0.000000e+00> : vector<8xf32>
    %67 = vector.multi_reduction <add>, %66, %cst_26 [1] : vector<8x8xf32> to vector<8xf32>
    %68 = vector.shape_cast %67 : vector<8xf32> to vector<8x1xf32>
    %69 = vector.broadcast %68 : vector<8x1xf32> to vector<8x8xf32>
    %70 = arith.divf %66, %69 : vector<8x8xf32>
    %71 = vector.extract_strided_slice %16 {offsets = [0, 2], sizes = [8, 1], strides = [1, 1]} : vector<8x4xf32> to vector<8x1xf32>
    %72 = vector.broadcast %71 : vector<8x1xf32> to vector<8x8xf32>
    %73 = arith.mulf %70, %72 : vector<8x8xf32>
    %cst_27 = arith.constant dense<0.000000e+00> : vector<8xf32>
    %74 = vector.multi_reduction <add>, %73, %cst_27 [0] : vector<8x8xf32> to vector<8xf32>
    %75 = vector.shape_cast %74 : vector<8xf32> to vector<1x8xf32>
    %76 = arith.addf %56, %75 : vector<1x8xf32>
    %77 = vector.extract_strided_slice %6 {offsets = [0, 32], sizes = [8, 16], strides = [1, 1]} : vector<8x64xf32> to vector<8x16xf32>
    %78 = tpu.transpose %77, [1, 0] : vector<8x16xf32> -> vector<16x8xf32>
    %cst_28 = arith.constant dense<0.000000e+00> : vector<16x8xf32>
    %79 = tpu.matmul %78, %73, %cst_28 {dimension_numbers = #tpu.dot_dimension_numbers<[1], [0], [0], [1], [0, 0, 1, 1], [], []>} : vector<16x8xf32>, vector<8x8xf32>, vector<16x8xf32> -> vector<16x8xf32>
    %80 = arith.addf %60, %79 : vector<16x8xf32>
    %81 = vector.extract_strided_slice %18 {offsets = [0, 24], sizes = [8, 8], strides = [1, 1]} : vector<8x32xf32> to vector<8x8xf32>
    %cst_29 = arith.constant dense<0xFF800000> : vector<8xf32>
    %82 = vector.multi_reduction <maximumf>, %81, %cst_29 [1] : vector<8x8xf32> to vector<8xf32>
    %83 = vector.shape_cast %82 : vector<8xf32> to vector<8x1xf32>
    %84 = vector.broadcast %83 : vector<8x1xf32> to vector<8x8xf32>
    %85 = arith.subf %81, %84 : vector<8x8xf32>
    %86 = math.exp %85 : vector<8x8xf32>
    %cst_30 = arith.constant dense<0.000000e+00> : vector<8xf32>
    %87 = vector.multi_reduction <add>, %86, %cst_30 [1] : vector<8x8xf32> to vector<8xf32>
    %88 = vector.shape_cast %87 : vector<8xf32> to vector<8x1xf32>
    %89 = vector.broadcast %88 : vector<8x1xf32> to vector<8x8xf32>
    %90 = arith.divf %86, %89 : vector<8x8xf32>
    %91 = vector.extract_strided_slice %16 {offsets = [0, 3], sizes = [8, 1], strides = [1, 1]} : vector<8x4xf32> to vector<8x1xf32>
    %92 = vector.broadcast %91 : vector<8x1xf32> to vector<8x8xf32>
    %93 = arith.mulf %90, %92 : vector<8x8xf32>
    %cst_31 = arith.constant dense<0.000000e+00> : vector<8xf32>
    %94 = vector.multi_reduction <add>, %93, %cst_31 [0] : vector<8x8xf32> to vector<8xf32>
    %95 = vector.shape_cast %94 : vector<8xf32> to vector<1x8xf32>
    %96 = arith.addf %76, %95 : vector<1x8xf32>
    %97 = vector.extract_strided_slice %6 {offsets = [0, 48], sizes = [8, 16], strides = [1, 1]} : vector<8x64xf32> to vector<8x16xf32>
    %98 = tpu.transpose %97, [1, 0] : vector<8x16xf32> -> vector<16x8xf32>
    %cst_32 = arith.constant dense<0.000000e+00> : vector<16x8xf32>
    %99 = tpu.matmul %98, %93, %cst_32 {dimension_numbers = #tpu.dot_dimension_numbers<[1], [0], [0], [1], [0, 0, 1, 1], [], []>} : vector<16x8xf32>, vector<8x8xf32>, vector<16x8xf32> -> vector<16x8xf32>
    %100 = arith.addf %80, %99 : vector<16x8xf32>
    %c0_33 = arith.constant 0 : index
    %c0_34 = arith.constant 0 : index
    %101 = vector.load %arg7[%c0_33, %c0_34] : memref<16x8xf32, #tpu.memory_space<vmem>>, vector<16x8xf32>
    %102 = vector.broadcast %96 : vector<1x8xf32> to vector<16x8xf32>
    %103 = arith.mulf %102, %101 : vector<16x8xf32>
    %104 = arith.subf %100, %103 : vector<16x8xf32>
    %105 = arith.mulf %104, %104 : vector<16x8xf32>
    %cst_35 = arith.constant dense<0.000000e+00> : vector<8xf32>
    %106 = vector.multi_reduction <add>, %105, %cst_35 [0] : vector<16x8xf32> to vector<8xf32>
    %107 = vector.shape_cast %106 : vector<8xf32> to vector<1x8xf32>
    %108 = math.sqrt %107 : vector<1x8xf32>
    %cst_36 = arith.constant 9.99999996E-13 : f32
    %109 = vector.broadcast %cst_36 : f32 to vector<1x8xf32>
    %110 = arith.maximumf %108, %109 : vector<1x8xf32>
    %111 = vector.broadcast %110 : vector<1x8xf32> to vector<16x8xf32>
    %112 = arith.divf %104, %111 : vector<16x8xf32>
    %c0_37 = arith.constant 0 : index
    %c0_38 = arith.constant 0 : index
    %c0_39 = arith.constant 0 : index
    %113 = vector.load %arg8[%c0_37, %c0_38, %c0_39] : memref<1x16x8xf32, #tpu.memory_space<vmem>>, vector<1x16x8xf32>
    %114 = vector.shape_cast %113 : vector<1x16x8xf32> to vector<16x8xf32>
    %115 = vector.shape_cast %112 : vector<16x8xf32> to vector<1x16x8xf32>
    tpu.vector_store %arg8[%c0_37, %c0_38, %c0_39], %115 {strides = array<i32>} : memref<1x16x8xf32, #tpu.memory_space<vmem>>, vector<1x16x8xf32>,
    return
  }
  func.func @transform_0(%arg0: i32) -> (i32, i32, i32) {
    %c0_i32 = arith.constant 0 : i32
    %c0_i32_0 = arith.constant 0 : i32
    %c0_i32_1 = arith.constant 0 : i32
    return %arg0, %c0_i32, %c0_i32_0 : i32, i32, i32
  }
  func.func @transform_1(%arg0: i32) -> (i32, i32) {
    %c0_i32 = arith.constant 0 : i32
    %c0_i32_0 = arith.constant 0 : i32
    %c0_i32_1 = arith.constant 0 : i32
    return %c0_i32, %c0_i32_0 : i32, i32
  }
  func.func @transform_2(%arg0: i32) -> (i32, i32) {
    %c0_i32 = arith.constant 0 : i32
    %c0_i32_0 = arith.constant 0 : i32
    %c0_i32_1 = arith.constant 0 : i32
    return %c0_i32, %c0_i32_0 : i32, i32
  }
  func.func @transform_3(%arg0: i32) -> (i32, i32) {
    %c0_i32 = arith.constant 0 : i32
    %c0_i32_0 = arith.constant 0 : i32
    %c0_i32_1 = arith.constant 0 : i32
    return %c0_i32, %c0_i32_0 : i32, i32
  }
  func.func @transform_4(%arg0: i32) -> (i32, i32) {
    %c0_i32 = arith.constant 0 : i32
    %c0_i32_0 = arith.constant 0 : i32
    %c0_i32_1 = arith.constant 0 : i32
    return %c0_i32, %c0_i32_0 : i32, i32
  }
  func.func @transform_5(%arg0: i32) -> (i32, i32) {
    %c0_i32 = arith.constant 0 : i32
    %c0_i32_0 = arith.constant 0 : i32
    %c0_i32_1 = arith.constant 0 : i32
    return %c0_i32, %c0_i32_0 : i32, i32
  }
  func.func @transform_6(%arg0: i32) -> (i32, i32) {
    %c0_i32 = arith.constant 0 : i32
    %c0_i32_0 = arith.constant 0 : i32
    %c0_i32_1 = arith.constant 0 : i32
    return %c0_i32, %c0_i32_0 : i32, i32
  }
  func.func @transform_7(%arg0: i32) -> (i32, i32, i32) {
    %c0_i32 = arith.constant 0 : i32
    %c0_i32_0 = arith.constant 0 : i32
    %c0_i32_1 = arith.constant 0 : i32
    return %arg0, %c0_i32, %c0_i32_0 : i32, i32, i32
  }
}

</mosaic_0001>

<llo_original>
// kernel: tpu_custom_call.1
$region0: #{tpu_custom_call.1}
  #allocation0 [shape = 'u32[]', space=smem, size = 0x4, offset = 0x4, fixed_abs, tag = 'smem constant byte address 0x4 - core index']
  #allocation1 [shape = 'u32[72,128]{1,0:T(1,128)}', space=vmem, size = 0x9000, scoped, tag = 'internal scratch']
  %s0 = inlined_call_operand.vmem [shape: f32[2,8,32], index: 0, kind: input, shape index: {}]
  %s1 = inlined_call_operand.vmem [shape: f32[32,64], index: 1, kind: input, shape index: {}]
  %s2 = inlined_call_operand.vmem [shape: f32[1,64], index: 2, kind: input, shape index: {}]
  %s3 = inlined_call_operand.vmem [shape: f32[64,4], index: 3, kind: input, shape index: {}]
  %s4 = inlined_call_operand.vmem [shape: f32[1,4], index: 4, kind: input, shape index: {}]
  %s5 = inlined_call_operand.vmem [shape: f32[64,32], index: 5, kind: input, shape index: {}]
  %s6 = inlined_call_operand.vmem [shape: f32[16,8], index: 6, kind: input, shape index: {}]
  %s7 = inlined_call_operand.vmem [shape: f32[2,16,8], index: 7, kind: output, shape index: {}]
  %s8 = sld [smem:[#allocation0]]
  $region61: #{tpu_custom_call.1} parent=0
    _
  %s10 = ssub.s32 1, %s8
  %s11 = scalar_select 0, %s10, %s8
  loop: start=0, step=1, limit=4
  $region2: #{tpu_custom_call.1} parent=0 // loop_pre_header
    _
  $region3: #{tpu_custom_call.1} parent=0 // loop_header
    %s13 = sphi 0, %s17
    %p14 = scmp.ge.s32.totalorder %s13, 4
    %s23 = sphi 0, %s25
    %s26 = sphi 0, %s23
    %s27 = sphi 0, %s26
    %s43 = sphi 0, %s27
    %s47 = sphi 0, %s47
    %s49 = sphi 0, %s47
    %s50 = sphi 0, %s49
    %s64 = sphi 0, %s50
    %s68 = sphi 0, %s68
    %s70 = sphi 0, %s68
    %s71 = sphi 0, %s70
    %s85 = sphi 0, %s71
    %s89 = sphi 0, %s89
    %s91 = sphi 0, %s89
    %s92 = sphi 0, %s91
    %s106 = sphi 0, %s92
    %s110 = sphi 0, %s110
    %s112 = sphi 0, %s110
    %s113 = sphi 0, %s112
    %s127 = sphi 0, %s113
    %s131 = sphi 0, %s131
    %s133 = sphi 0, %s131
    %s134 = sphi 0, %s133
    %s148 = sphi 0, %s134
    %s152 = sphi 0, %s152
    %s154 = sphi 0, %s152
    %s155 = sphi 0, %s154
    %s169 = sphi 0, %s155
    %s175 = sphi 0, %s177
    %s178 = sphi 0, %s175
    %s179 = sphi 0, %s178
    %s195 = sphi 0, %s179
  $region4: #{tpu_custom_call.1} parent=0 // loop_header_branch
    %16 = sbr.rel (%p14) target = $region8
  $region5: #{tpu_custom_call.1} parent=0 // loop_body
    %s18 = ssub.s32 %s13, 1
    %s19 = ssub.s32 %s13, 2
    %s20 = sadd.s32 %s13, 1
    %s21 = ssub.s32 %s13, %s20
    %p22 = scmp.eq.s32.totalorder %s21, 0
    %s24 = sadd.s32 %s23, 1
    %s25 = scalar_select %p22, %s23, %s24
    %p28 = pneg %p22
    %p29 = scmp.eq.s32.totalorder %s13, 1
    %p30 = por %p28, %p29
    %p31 = scmp.ne.s32.totalorder %s23, %s26
    %p32 = scmp.eq.s32.totalorder %s13, 0
    %p33 = por %p31, %p32
    %p34 = scmp.ne.s32.totalorder %s23, %s26
    %p35 = scmp.eq.s32.totalorder %s18, 1
    %p36 = por %p34, %p35
    %p37 = scmp.ne.s32.totalorder %s26, %s27
    %p38 = scmp.eq.s32.totalorder %s18, 0
    %p39 = por %p37, %p38
    %p40 = scmp.ne.s32.totalorder %s26, %s27
    %p41 = scmp.eq.s32.totalorder %s19, 1
    %p42 = por %p40, %p41
    %p44 = scmp.ne.s32.totalorder %s27, %s43
    %p45 = scmp.eq.s32.totalorder %s19, 0
    %p46 = por %p44, %p45
    %s48 = sadd.s32 %s47, 1
    %p51 = scmp.eq.s32.totalorder %s13, 1
    %p52 = scmp.ne.s32.totalorder %s47, %s49
    %p53 = scmp.eq.s32.totalorder %s13, 0
    %p54 = por %p52, %p53
    %p55 = scmp.ne.s32.totalorder %s47, %s49
    %p56 = scmp.eq.s32.totalorder %s18, 1
    %p57 = por %p55, %p56
    %p58 = scmp.ne.s32.totalorder %s49, %s50
    %p59 = scmp.eq.s32.totalorder %s18, 0
    %p60 = por %p58, %p59
    %p61 = scmp.ne.s32.totalorder %s49, %s50
    %p62 = scmp.eq.s32.totalorder %s19, 1
    %p63 = por %p61, %p62
    %p65 = scmp.ne.s32.totalorder %s50, %s64
    %p66 = scmp.eq.s32.totalorder %s19, 0
    %p67 = por %p65, %p66
    %s69 = sadd.s32 %s68, 1
    %p72 = scmp.eq.s32.totalorder %s13, 1
    %p73 = scmp.ne.s32.totalorder %s68, %s70
    %p74 = scmp.eq.s32.totalorder %s13, 0
    %p75 = por %p73, %p74
    %p76 = scmp.ne.s32.totalorder %s68, %s70
    %p77 = scmp.eq.s32.totalorder %s18, 1
    %p78 = por %p76, %p77
    %p79 = scmp.ne.s32.totalorder %s70, %s71
    %p80 = scmp.eq.s32.totalorder %s18, 0
    %p81 = por %p79, %p80
    %p82 = scmp.ne.s32.totalorder %s70, %s71
    %p83 = scmp.eq.s32.totalorder %s19, 1
    %p84 = por %p82, %p83
    %p86 = scmp.ne.s32.totalorder %s71, %s85
    %p87 = scmp.eq.s32.totalorder %s19, 0
    %p88 = por %p86, %p87
    %s90 = sadd.s32 %s89, 1
    %p93 = scmp.eq.s32.totalorder %s13, 1
    %p94 = scmp.ne.s32.totalorder %s89, %s91
    %p95 = scmp.eq.s32.totalorder %s13, 0
    %p96 = por %p94, %p95
    %p97 = scmp.ne.s32.totalorder %s89, %s91
    %p98 = scmp.eq.s32.totalorder %s18, 1
    %p99 = por %p97, %p98
    %p100 = scmp.ne.s32.totalorder %s91, %s92
    %p101 = scmp.eq.s32.totalorder %s18, 0
    %p102 = por %p100, %p101
    %p103 = scmp.ne.s32.totalorder %s91, %s92
    %p104 = scmp.eq.s32.totalorder %s19, 1
    %p105 = por %p103, %p104
    %p107 = scmp.ne.s32.totalorder %s92, %s106
    %p108 = scmp.eq.s32.totalorder %s19, 0
    %p109 = por %p107, %p108
    %s111 = sadd.s32 %s110, 1
    %p114 = scmp.eq.s32.totalorder %s13, 1
    %p115 = scmp.ne.s32.totalorder %s110, %s112
    %p116 = scmp.eq.s32.totalorder %s13, 0
    %p117 = por %p115, %p116
    %p118 = scmp.ne.s32.totalorder %s110, %s112
    %p119 = scmp.eq.s32.totalorder %s18, 1
    %p120 = por %p118, %p119
    %p121 = scmp.ne.s32.totalorder %s112, %s113
    %p122 = scmp.eq.s32.totalorder %s18, 0
    %p123 = por %p121, %p122
    %p124 = scmp.ne.s32.totalorder %s112, %s113
    %p125 = scmp.eq.s32.totalorder %s19, 1
    %p126 = por %p124, %p125
    %p128 = scmp.ne.s32.totalorder %s113, %s127
    %p129 = scmp.eq.s32.totalorder %s19, 0
    %p130 = por %p128, %p129
    %s132 = sadd.s32 %s131, 1
    %p135 = scmp.eq.s32.totalorder %s13, 1
    %p136 = scmp.ne.s32.totalorder %s131, %s133
    %p137 = scmp.eq.s32.totalorder %s13, 0
    %p138 = por %p136, %p137
    %p139 = scmp.ne.s32.totalorder %s131, %s133
    %p140 = scmp.eq.s32.totalorder %s18, 1
    %p141 = por %p139, %p140
    %p142 = scmp.ne.s32.totalorder %s133, %s134
    %p143 = scmp.eq.s32.totalorder %s18, 0
    %p144 = por %p142, %p143
    %p145 = scmp.ne.s32.totalorder %s133, %s134
    %p146 = scmp.eq.s32.totalorder %s19, 1
    %p147 = por %p145, %p146
    %p149 = scmp.ne.s32.totalorder %s134, %s148
    %p150 = scmp.eq.s32.totalorder %s19, 0
    %p151 = por %p149, %p150
    %s153 = sadd.s32 %s152, 1
    %p156 = scmp.eq.s32.totalorder %s13, 1
    %p157 = scmp.ne.s32.totalorder %s152, %s154
    %p158 = scmp.eq.s32.totalorder %s13, 0
    %p159 = por %p157, %p158
    %p160 = scmp.ne.s32.totalorder %s152, %s154
    %p161 = scmp.eq.s32.totalorder %s18, 1
    %p162 = por %p160, %p161
    %p163 = scmp.ne.s32.totalorder %s154, %s155
    %p164 = scmp.eq.s32.totalorder %s18, 0
    %p165 = por %p163, %p164
    %p166 = scmp.ne.s32.totalorder %s154, %s155
    %p167 = scmp.eq.s32.totalorder %s19, 1
    %p168 = por %p166, %p167
    %p170 = scmp.ne.s32.totalorder %s155, %s169
    %p171 = scmp.eq.s32.totalorder %s19, 0
    %p172 = por %p170, %p171
    %s173 = ssub.s32 %s13, %s20
    %p174 = scmp.eq.s32.totalorder %s173, 0
    %s176 = sadd.s32 %s175, 1
    %s177 = scalar_select %p174, %s175, %s176
    %p180 = pneg %p174
    %p181 = scmp.eq.s32.totalorder %s13, 1
    %p182 = por %p180, %p181
    %p183 = scmp.ne.s32.totalorder %s175, %s178
    %p184 = scmp.eq.s32.totalorder %s13, 0
    %p185 = por %p183, %p184
    %p186 = scmp.ne.s32.totalorder %s175, %s178
    %p187 = scmp.eq.s32.totalorder %s18, 1
    %p188 = por %p186, %p187
    %p189 = scmp.ne.s32.totalorder %s178, %s179
    %p190 = scmp.eq.s32.totalorder %s18, 0
    %p191 = por %p189, %p190
    %p192 = scmp.ne.s32.totalorder %s178, %s179
    %p193 = scmp.eq.s32.totalorder %s19, 1
    %p194 = por %p192, %p193
    %p196 = scmp.ne.s32.totalorder %s179, %s195
    %p197 = scmp.eq.s32.totalorder %s19, 0
    %p198 = por %p196, %p197
    %p199 = scmp.le.s32.totalorder 1, %s13
    %p200 = scmp.lt.s32.totalorder %s13, 3
    %p201 = pnand %p199, %p200
    %p202 = pneg %p201
    // Predicated region
    $region9: #{tpu_custom_call.1} parent=5 // pred_check
      _
    $region10: #{tpu_custom_call.1} parent=5 // pred_check_branch
      %204 = sbr.rel (%p201) target = $region12
    $region11: #{tpu_custom_call.1} parent=5 // pred_region
      %s205 = ssub.s32 %s13, 1
      // Predicated region
      $region13: #{tpu_custom_call.1} parent=11 // pred_check
        %p206 = pneg %p60
      $region14: #{tpu_custom_call.1} parent=11 // pred_check_branch
        %208 = sbr.rel (%p206) target = $region16
      $region15: #{tpu_custom_call.1} parent=11 // pred_region
        _
      $region16: #{tpu_custom_call.1} parent=11 // pred_fallthru
        _
      // Predicated region
      $region17: #{tpu_custom_call.1} parent=11 // pred_check
        %p209 = pneg %p81
      $region18: #{tpu_custom_call.1} parent=11 // pred_check_branch
        %211 = sbr.rel (%p209) target = $region20
      $region19: #{tpu_custom_call.1} parent=11 // pred_region
        _
      $region20: #{tpu_custom_call.1} parent=11 // pred_fallthru
        _
      // Predicated region
      $region21: #{tpu_custom_call.1} parent=11 // pred_check
        %p212 = pneg %p102
      $region22: #{tpu_custom_call.1} parent=11 // pred_check_branch
        %214 = sbr.rel (%p212) target = $region24
      $region23: #{tpu_custom_call.1} parent=11 // pred_region
        _
      $region24: #{tpu_custom_call.1} parent=11 // pred_fallthru
        _
      // Predicated region
      $region25: #{tpu_custom_call.1} parent=11 // pred_check
        %p215 = pneg %p123
      $region26: #{tpu_custom_call.1} parent=11 // pred_check_branch
        %217 = sbr.rel (%p215) target = $region28
      $region27: #{tpu_custom_call.1} parent=11 // pred_region
        _
      $region28: #{tpu_custom_call.1} parent=11 // pred_fallthru
        _
      // Predicated region
      $region29: #{tpu_custom_call.1} parent=11 // pred_check
        %p218 = pneg %p144
      $region30: #{tpu_custom_call.1} parent=11 // pred_check_branch
        %220 = sbr.rel (%p218) target = $region32
      $region31: #{tpu_custom_call.1} parent=11 // pred_region
        _
      $region32: #{tpu_custom_call.1} parent=11 // pred_fallthru
        _
      // Predicated region
      $region33: #{tpu_custom_call.1} parent=11 // pred_check
        %p221 = pneg %p165
      $region34: #{tpu_custom_call.1} parent=11 // pred_check_branch
        %223 = sbr.rel (%p221) target = $region36
      $region35: #{tpu_custom_call.1} parent=11 // pred_region
        _
      $region36: #{tpu_custom_call.1} parent=11 // pred_fallthru
        _
    $region12: #{tpu_custom_call.1} parent=5 // pred_fallthru
      _
    %p224 = scmp.lt.s32.totalorder %s13, 2
    // Predicated region
    $region37: #{tpu_custom_call.1} parent=5 // pred_check
      %p225 = pneg %p224
    $region38: #{tpu_custom_call.1} parent=5 // pred_check_branch
      %227 = sbr.rel (%p225) target = $region40
    $region39: #{tpu_custom_call.1} parent=5 // pred_region
      // Predicated region
      $region41: #{tpu_custom_call.1} parent=39 // pred_check
        %p228 = pneg %p33
      $region42: #{tpu_custom_call.1} parent=39 // pred_check_branch
        %230 = sbr.rel (%p228) target = $region44
      $region43: #{tpu_custom_call.1} parent=39 // pred_region
        %p231 = scmp.lt.s32.totalorder %s13, 1
        %s232 = scalar_select %p231, %s13, 1
        %s233 = smul.addr %s232, 8
        %s234 = scalar_lea.vmem %s0, %s233
      $region44: #{tpu_custom_call.1} parent=39 // pred_fallthru
        _
    $region40: #{tpu_custom_call.1} parent=5 // pred_fallthru
      _
    %p235 = scmp.le.s32.totalorder 1, %s13
    %p236 = scmp.lt.s32.totalorder %s13, 3
    %p237 = pnand %p235, %p236
    %p238 = pneg %p237
    // Predicated region
    $region45: #{tpu_custom_call.1} parent=5 // pred_check
      _
    $region46: #{tpu_custom_call.1} parent=5 // pred_check_branch
      %240 = sbr.rel (%p237) target = $region48
    $region47: #{tpu_custom_call.1} parent=5 // pred_region
      %s241 = ssub.s32 %s13, 1
      %p242 = scmp.lt.s32.totalorder %s18, 1
      %s243 = scalar_select %p242, %s18, 1
      %s244 = smul.addr %s243, 8
      %s245 = scalar_lea.vmem %s0, %s244
      %p246 = pneg %p39
      %p247 = pneg %p36
      %p248 = pneg %p60
      %p249 = pneg %p57
      %p250 = pneg %p81
      %p251 = pneg %p78
      %p252 = pneg %p102
      %p253 = pneg %p99
      %p254 = pneg %p123
      %p255 = pneg %p120
      %p256 = pneg %p144
      %p257 = pneg %p141
      %p258 = pneg %p165
      %p259 = pneg %p162
      %p260 = pneg %p191
      %p261 = pneg %p188
      %p262 = scmp.lt.s32.totalorder %s18, 1
      %s263 = scalar_select %p262, %s18, 1
      %s264 = smul.addr %s263, 2
      %s265 = smul.addr %s264, 8
      %s266 = scalar_lea.vmem %s7, %s265
      %p267 = scmp.lt.s32.totalorder %s18, 1
      %s268 = scalar_select %p267, %s18, 1
      %s269 = smul.addr %s268, 8
      %s270 = scalar_lea.vmem %s0, %s269
      %p271 = scmp.lt.s32.totalorder %s18, 1
      %s272 = scalar_select %p271, %s18, 1
      %s273 = smul.addr %s272, 2
      %s274 = smul.addr %s273, 8
      %s275 = scalar_lea.vmem %s7, %s274
      %v276 = vld [vmem:[%s270] sm:$0xff]
      %v277 = vld [vmem:[%s1] sm:$0xff]
      %v278 = vld [vmem:[%s1 + $0x8] sm:$0xff]
      %v279 = vld [vmem:[%s1 + $0x10] sm:$0xff]
      %v280 = vld [vmem:[%s1 + $0x18] sm:$0xff]
      %v281 = vld [vmem:[%s2] sm:$0x1]
      %v283 = vperm.slane %v281, 0
      %vm285 = vcmask 261120
      %v287 = vsel %vm285, %v276, 0
      %289 = vmatpush.msra.mxu0 0.0
      %290 = vmatpush.msra.mxu0 0.0
      %291 = vmatpush.msra.mxu0 0.0
      %292 = vmatpush.msra.mxu0 0.0
      %293 = vmatpush.msra.mxu0 0.0
      %294 = vmatpush.msra.mxu0 0.0
      %295 = vmatpush.msra.mxu0 0.0
      %296 = vmatpush.msra.mxu0 0.0
      %297 = vmatpush.msra.mxu0 0.0
      %298 = vmatpush.msra.mxu0 0.0
      %299 = vmatpush.msra.mxu0 0.0
      %300 = vmatpush.msra.mxu0 0.0
      %301 = vmatpush.msra.mxu0 %v280
      %302 = vmatpush.msra.mxu0 %v279
      %303 = vmatpush.msra.mxu0 %v278
      %304 = vmatpush.msra.mxu0 %v277
      %305 = vmatmul.f32.gmra.mxu0 %v287
      %v306 = vpop.f32.mrf.mxu0
      %v307 = vadd.f32 %v283, %v306
      %308 = vdwg.mxu0
      %v309 = vld [vmem:[%s3] sm:$0xff]
      %v310 = vld [vmem:[%s3 + $0x8] sm:$0xff]
      %v311 = vld [vmem:[%s3 + $0x10] sm:$0xff]
      %v312 = vld [vmem:[%s3 + $0x18] sm:$0xff]
      %v313 = vld [vmem:[%s3 + $0x20] sm:$0xff]
      %v314 = vld [vmem:[%s3 + $0x28] sm:$0xff]
      %v315 = vld [vmem:[%s3 + $0x30] sm:$0xff]
      %v316 = vld [vmem:[%s3 + $0x38] sm:$0xff]
      %v317 = vld [vmem:[%s4] sm:$0x1]
      %v319 = vperm.slane %v317, 0
      %vm321 = vcmask 523264
      %v323 = vsel %vm321, %v307, 0
      %325 = vmatpush.msra.mxu0 0.0
      %326 = vmatpush.msra.mxu0 0.0
      %327 = vmatpush.msra.mxu0 0.0
      %328 = vmatpush.msra.mxu0 0.0
      %329 = vmatpush.msra.mxu0 0.0
      %330 = vmatpush.msra.mxu0 0.0
      %331 = vmatpush.msra.mxu0 0.0
      %332 = vmatpush.msra.mxu0 0.0
      %333 = vmatpush.msra.mxu0 %v316
      %334 = vmatpush.msra.mxu0 %v315
      %335 = vmatpush.msra.mxu0 %v314
      %336 = vmatpush.msra.mxu0 %v313
      %337 = vmatpush.msra.mxu0 %v312
      %338 = vmatpush.msra.mxu0 %v311
      %339 = vmatpush.msra.mxu0 %v310
      %340 = vmatpush.msra.mxu0 %v309
      %341 = vmatmul.f32.gmra.mxu0 %v323
      %v342 = vpop.f32.mrf.mxu0
      %v343 = vadd.f32 %v319, %v342
      %344 = vdwg.mxu0
      %v345 = vxor.u32 %v343, 2147483648
      %v346 = vmul.f32 %v345, 1.442695
      %v347 = vpow.pop %v346
      %v348 = vadd.f32 %v347, 1.0
      %v349 = vrcp.pop %v348
      %v350 = vmul.f32 %v348, %v349
      %v351 = vsub.f32 1.0, %v350
      %v352 = vmul.f32 %v349, %v351
      %v353 = vadd.f32 %v349, %v352
      %vm354 = vweird.f32 %v348
      %vm355 = vweird.f32 %v349
      %vm356 = vmor %vm354, %vm355
      %v357 = vsel %vm356, %v349, %v353
      %v358 = vand.u32 2147483647, %v348
      %vm359 = vcmp.eq.f32.partialorder %v358, 8.507059e+37
      %v360 = vand.u32 %v348, 2147483648
      %v361 = vor.u32 1.1754944e-38, %v360
      %v362 = vsel %vm359, %v361, %v357
      %v363 = vmul.f32 1.0, %v362
      %v364 = vld [vmem:[%s5] sm:$0xff]
      %v365 = vld [vmem:[%s5 + $0x8] sm:$0xff]
      %v366 = vld [vmem:[%s5 + $0x10] sm:$0xff]
      %v367 = vld [vmem:[%s5 + $0x18] sm:$0xff]
      %v368 = vld [vmem:[%s5 + $0x20] sm:$0xff]
      %v369 = vld [vmem:[%s5 + $0x28] sm:$0xff]
      %v370 = vld [vmem:[%s5 + $0x30] sm:$0xff]
      %v371 = vld [vmem:[%s5 + $0x38] sm:$0xff]
      %372 = vmatpush.msra.mxu0 0.0
      %373 = vmatpush.msra.mxu0 0.0
      %374 = vmatpush.msra.mxu0 0.0
      %375 = vmatpush.msra.mxu0 0.0
      %376 = vmatpush.msra.mxu0 0.0
      %377 = vmatpush.msra.mxu0 0.0
      %378 = vmatpush.msra.mxu0 0.0
      %379 = vmatpush.msra.mxu0 0.0
      %380 = vmatpush.msra.mxu0 %v371
      %381 = vmatpush.msra.mxu0 %v370
      %382 = vmatpush.msra.mxu0 %v369
      %383 = vmatpush.msra.mxu0 %v368
      %384 = vmatpush.msra.mxu0 %v367
      %385 = vmatpush.msra.mxu0 %v366
      %386 = vmatpush.msra.mxu0 %v365
      %387 = vmatpush.msra.mxu0 %v364
      %388 = vmatmul.f32.gmra.mxu0 %v323
      %v389 = vpop.f32.mrf.mxu0
      %v390 = vadd.f32 0.0, %v389
      %391 = vdwg.mxu0
      %vm392 = vcmask 64512
      %v393 = vsel %vm392, %v390, -inf
      %394 = vmax.xlane.f32.xlu0 %v393
      %v395 = vpop.xlane.xlu0 %394
      %v396 = vsub.f32 %v390, %v395
      %v397 = vmul.f32 %v396, 1.442695
      %v398 = vpow.pop %v397
      %v399 = vsel %vm392, %v398, 0.0
      %400 = vadd.xlane.f32.xlu0 %v399
      %v401 = vpop.xlane.xlu0 %400
      %v402 = vrcp.pop %v401
      %v403 = vmul.f32 %v401, %v402
      %v404 = vsub.f32 1.0, %v403
      %v405 = vmul.f32 %v402, %v404
      %v406 = vadd.f32 %v402, %v405
      %vm407 = vweird.f32 %v401
      %vm408 = vweird.f32 %v402
      %vm409 = vmor %vm407, %vm408
      %v410 = vsel %vm409, %v402, %v406
      %v411 = vand.u32 2147483647, %v401
      %vm412 = vcmp.eq.f32.partialorder %v411, 8.507059e+37
      %v413 = vand.u32 %v401, 2147483648
      %v414 = vor.u32 1.1754944e-38, %v413
      %v415 = vsel %vm412, %v414, %v410
      %v416 = vmul.f32 %v398, %v415
      %418 = vset.pattern.permute.xlu0 0
      %419 = vperm.xlu0 %418, %v363
      %v420 = vpop.permute.xlu0 %419
      %v422 = vmul.f32 %v416, %v420
      %v423 = vsel %vm392, %v422, 0.0
      %v424 = vrot.slane %v423, 4
      %v425 = vadd.f32 %v423, %v424
      %v426 = vrot.slane %v425, 2
      %v427 = vadd.f32 %v425, %v426
      %v428 = vrot.slane %v427, 1
      %v429 = vadd.f32 %v427, %v428
      %v430 = vadd.f32 %v429, 0.0
      %431 = vxpose.xlu0.b32.start [1/16] %v307, 128
      %432 = vxpose.xlu0.b32.cont [2/16] 0.0, 128
      %433 = vxpose.xlu0.b32.cont [3/16] 0.0, 128
      %434 = vxpose.xlu0.b32.cont [4/16] 0.0, 128
      %435 = vxpose.xlu0.b32.cont [5/16] 0.0, 128
      %436 = vxpose.xlu0.b32.cont [6/16] 0.0, 128
      %437 = vxpose.xlu0.b32.cont [7/16] 0.0, 128
      %438 = vxpose.xlu0.b32.cont [8/16] 0.0, 128
      %439 = vxpose.xlu0.b32.cont [9/16] 0.0, 128
      %440 = vxpose.xlu0.b32.cont [10/16] 0.0, 128
      %441 = vxpose.xlu0.b32.cont [11/16] 0.0, 128
      %442 = vxpose.xlu0.b32.cont [12/16] 0.0, 128
      %443 = vxpose.xlu0.b32.cont [13/16] 0.0, 128
      %444 = vxpose.xlu0.b32.cont [14/16] 0.0, 128
      %445 = vxpose.xlu0.b32.cont [15/16] 0.0, 128
      %446 = vxpose.xlu0.b32.end [16/16] 0.0, 128
      %v447 = vpop.trf.xlu0
      %v448 = vpop.trf.xlu0
      %v449 = vpop.trf.xlu0
      %v450 = vpop.trf.xlu0
      %v451 = vpop.trf.xlu0
      %v452 = vpop.trf.xlu0
      %v453 = vpop.trf.xlu0
      %v454 = vpop.trf.xlu0
      %v455 = vpop.trf.xlu0
      %v456 = vpop.trf.xlu0
      %v457 = vpop.trf.xlu0
      %v458 = vpop.trf.xlu0
      %v459 = vpop.trf.xlu0
      %v460 = vpop.trf.xlu0
      %v461 = vpop.trf.xlu0
      %v462 = vpop.trf.xlu0
      %vm463 = vcmask 130112
      %v464 = vsel %vm463, %v390, -inf
      %465 = vmax.xlane.f32.xlu0 %v464
      %v466 = vpop.xlane.xlu0 %465
      %v467 = vsub.f32 %v390, %v466
      %v468 = vmul.f32 %v467, 1.442695
      %v469 = vpow.pop %v468
      %471 = vrot.lane.b32.xlu0 %v469, 120
      %v472 = vpop.permute.xlu0 %471
      %v474 = vsel %vm392, %v472, 0.0
      %475 = vadd.xlane.f32.xlu0 %v474
      %v476 = vpop.xlane.xlu0 %475
      %v477 = vrcp.pop %v476
      %v478 = vmul.f32 %v476, %v477
      %v479 = vsub.f32 1.0, %v478
      %v480 = vmul.f32 %v477, %v479
      %v481 = vadd.f32 %v477, %v480
      %vm482 = vweird.f32 %v476
      %vm483 = vweird.f32 %v477
      %vm484 = vmor %vm482, %vm483
      %v485 = vsel %vm484, %v477, %v481
      %v486 = vand.u32 2147483647, %v476
      %vm487 = vcmp.eq.f32.partialorder %v486, 8.507059e+37
      %v488 = vand.u32 %v476, 2147483648
      %v489 = vor.u32 1.1754944e-38, %v488
      %v490 = vsel %vm487, %v489, %v485
      %v491 = vmul.f32 %v469, %v490
      %492 = vset.pattern.permute.xlu0 1
      %493 = vperm.xlu0 %492, %v363
      %v494 = vpop.permute.xlu0 %493
      %v496 = vmul.f32 %v491, %v494
      %v497 = vsel %vm463, %v496, 0.0
      %v498 = vrot.slane %v497, 4
      %v499 = vadd.f32 %v497, %v498
      %v500 = vrot.slane %v499, 2
      %v501 = vadd.f32 %v499, %v500
      %v502 = vrot.slane %v501, 1
      %v503 = vadd.f32 %v501, %v502
      %505 = vrot.lane.b32.xlu0 %v503, 120
      %v506 = vpop.permute.xlu0 %505
      %v508 = vadd.f32 %v430, %v506
      %509 = vrot.lane.b32.xlu0 %v307, 112
      %v510 = vpop.permute.xlu0 %509
      %512 = vxpose.xlu0.b32.start [1/16] %v510, 128
      %513 = vxpose.xlu0.b32.cont [2/16] 0.0, 128
      %514 = vxpose.xlu0.b32.cont [3/16] 0.0, 128
      %515 = vxpose.xlu0.b32.cont [4/16] 0.0, 128
      %516 = vxpose.xlu0.b32.cont [5/16] 0.0, 128
      %517 = vxpose.xlu0.b32.cont [6/16] 0.0, 128
      %518 = vxpose.xlu0.b32.cont [7/16] 0.0, 128
      %519 = vxpose.xlu0.b32.cont [8/16] 0.0, 128
      %520 = vxpose.xlu0.b32.cont [9/16] 0.0, 128
      %521 = vxpose.xlu0.b32.cont [10/16] 0.0, 128
      %522 = vxpose.xlu0.b32.cont [11/16] 0.0, 128
      %523 = vxpose.xlu0.b32.cont [12/16] 0.0, 128
      %524 = vxpose.xlu0.b32.cont [13/16] 0.0, 128
      %525 = vxpose.xlu0.b32.cont [14/16] 0.0, 128
      %526 = vxpose.xlu0.b32.cont [15/16] 0.0, 128
      %527 = vxpose.xlu0.b32.end [16/16] 0.0, 128
      %v528 = vpop.trf.xlu0
      %v529 = vpop.trf.xlu0
      %v530 = vpop.trf.xlu0
      %v531 = vpop.trf.xlu0
      %v532 = vpop.trf.xlu0
      %v533 = vpop.trf.xlu0
      %v534 = vpop.trf.xlu0
      %v535 = vpop.trf.xlu0
      %v536 = vpop.trf.xlu0
      %v537 = vpop.trf.xlu0
      %v538 = vpop.trf.xlu0
      %v539 = vpop.trf.xlu0
      %v540 = vpop.trf.xlu0
      %v541 = vpop.trf.xlu0
      %v542 = vpop.trf.xlu0
      %v543 = vpop.trf.xlu0
      %545 = vrot.lane.b32.xlu0 %v496, 120
      %v546 = vpop.permute.xlu0 %545
      %v549 = vsel %vm392, %v528, 0
      %v552 = vsel %vm392, %v529, 0
      %554 = vmatpush.msra.mxu0 0.0
      %555 = vmatpush.msra.mxu0 0.0
      %556 = vmatpush.msra.mxu0 0.0
      %557 = vmatpush.msra.mxu0 0.0
      %558 = vmatpush.msra.mxu0 0.0
      %559 = vmatpush.msra.mxu0 0.0
      %560 = vmatpush.msra.mxu0 0.0
      %561 = vmatpush.msra.mxu0 0.0
      %562 = vmatpush.msra.mxu0 0.0
      %563 = vmatpush.msra.mxu0 0.0
      %564 = vmatpush.msra.mxu0 0.0
      %565 = vmatpush.msra.mxu0 0.0
      %566 = vmatpush.msra.mxu0 0.0
      %567 = vmatpush.msra.mxu0 0.0
      %568 = vmatpush.msra.mxu0 0.0
      %569 = vmatpush.msra.mxu0 %v546
      %570 = vmatmul.f32.gmra.mxu0 %v549
      %v571 = vpop.f32.mrf.mxu0
      %v572 = vadd.f32 0.0, %v571
      %573 = vmatmul.f32.gmra.mxu0 %v552
      %v574 = vpop.f32.mrf.mxu0
      %v575 = vadd.f32 0.0, %v574
      %576 = vdwg.mxu0
      %v578 = vsel %vm392, %v447, 0
      %v581 = vsel %vm392, %v448, 0
      %583 = vmatpush.msra.mxu0 0.0
      %584 = vmatpush.msra.mxu0 0.0
      %585 = vmatpush.msra.mxu0 0.0
      %586 = vmatpush.msra.mxu0 0.0
      %587 = vmatpush.msra.mxu0 0.0
      %588 = vmatpush.msra.mxu0 0.0
      %589 = vmatpush.msra.mxu0 0.0
      %590 = vmatpush.msra.mxu0 0.0
      %591 = vmatpush.msra.mxu0 0.0
      %592 = vmatpush.msra.mxu0 0.0
      %593 = vmatpush.msra.mxu0 0.0
      %594 = vmatpush.msra.mxu0 0.0
      %595 = vmatpush.msra.mxu0 0.0
      %596 = vmatpush.msra.mxu0 0.0
      %597 = vmatpush.msra.mxu0 0.0
      %598 = vmatpush.msra.mxu0 %v422
      %599 = vmatmul.f32.gmra.mxu0 %v578
      %v600 = vpop.f32.mrf.mxu0
      %v601 = vadd.f32 %v572, %v600
      %602 = vmatmul.f32.gmra.mxu0 %v581
      %v603 = vpop.f32.mrf.mxu0
      %v604 = vadd.f32 %v575, %v603
      %605 = vdwg.mxu0
      %vm606 = vcmask 195712
      %v607 = vsel %vm606, %v390, -inf
      %608 = vmax.xlane.f32.xlu0 %v607
      %v609 = vpop.xlane.xlu0 %608
      %v610 = vsub.f32 %v390, %v609
      %v611 = vmul.f32 %v610, 1.442695
      %v612 = vpow.pop %v611
      %614 = vrot.lane.b32.xlu0 %v612, 112
      %v615 = vpop.permute.xlu0 %614
      %v617 = vsel %vm392, %v615, 0.0
      %618 = vadd.xlane.f32.xlu0 %v617
      %v619 = vpop.xlane.xlu0 %618
      %v620 = vrcp.pop %v619
      %v621 = vmul.f32 %v619, %v620
      %v622 = vsub.f32 1.0, %v621
      %v623 = vmul.f32 %v620, %v622
      %v624 = vadd.f32 %v620, %v623
      %vm625 = vweird.f32 %v619
      %vm626 = vweird.f32 %v620
      %vm627 = vmor %vm625, %vm626
      %v628 = vsel %vm627, %v620, %v624
      %v629 = vand.u32 2147483647, %v619
      %vm630 = vcmp.eq.f32.partialorder %v629, 8.507059e+37
      %v631 = vand.u32 %v619, 2147483648
      %v632 = vor.u32 1.1754944e-38, %v631
      %v633 = vsel %vm630, %v632, %v628
      %v634 = vmul.f32 %v612, %v633
      %635 = vset.pattern.permute.xlu0 2
      %636 = vperm.xlu0 %635, %v363
      %v637 = vpop.permute.xlu0 %636
      %v639 = vmul.f32 %v634, %v637
      %v640 = vsel %vm606, %v639, 0.0
      %v641 = vrot.slane %v640, 4
      %v642 = vadd.f32 %v640, %v641
      %v643 = vrot.slane %v642, 2
      %v644 = vadd.f32 %v642, %v643
      %v645 = vrot.slane %v644, 1
      %v646 = vadd.f32 %v644, %v645
      %648 = vrot.lane.b32.xlu0 %v646, 112
      %v649 = vpop.permute.xlu0 %648
      %v651 = vadd.f32 %v508, %v649
      %652 = vrot.lane.b32.xlu0 %v307, 96
      %v653 = vpop.permute.xlu0 %652
      %655 = vxpose.xlu0.b32.start [1/16] %v653, 128
      %656 = vxpose.xlu0.b32.cont [2/16] 0.0, 128
      %657 = vxpose.xlu0.b32.cont [3/16] 0.0, 128
      %658 = vxpose.xlu0.b32.cont [4/16] 0.0, 128
      %659 = vxpose.xlu0.b32.cont [5/16] 0.0, 128
      %660 = vxpose.xlu0.b32.cont [6/16] 0.0, 128
      %661 = vxpose.xlu0.b32.cont [7/16] 0.0, 128
      %662 = vxpose.xlu0.b32.cont [8/16] 0.0, 128
      %663 = vxpose.xlu0.b32.cont [9/16] 0.0, 128
      %664 = vxpose.xlu0.b32.cont [10/16] 0.0, 128
      %665 = vxpose.xlu0.b32.cont [11/16] 0.0, 128
      %666 = vxpose.xlu0.b32.cont [12/16] 0.0, 128
      %667 = vxpose.xlu0.b32.cont [13/16] 0.0, 128
      %668 = vxpose.xlu0.b32.cont [14/16] 0.0, 128
      %669 = vxpose.xlu0.b32.cont [15/16] 0.0, 128
      %670 = vxpose.xlu0.b32.end [16/16] 0.0, 128
      %v671 = vpop.trf.xlu0
      %v672 = vpop.trf.xlu0
      %v673 = vpop.trf.xlu0
      %v674 = vpop.trf.xlu0
      %v675 = vpop.trf.xlu0
      %v676 = vpop.trf.xlu0
      %v677 = vpop.trf.xlu0
      %v678 = vpop.trf.xlu0
      %v679 = vpop.trf.xlu0
      %v680 = vpop.trf.xlu0
      %v681 = vpop.trf.xlu0
      %v682 = vpop.trf.xlu0
      %v683 = vpop.trf.xlu0
      %v684 = vpop.trf.xlu0
      %v685 = vpop.trf.xlu0
      %v686 = vpop.trf.xlu0
      %688 = vrot.lane.b32.xlu0 %v639, 112
      %v689 = vpop.permute.xlu0 %688
      %v692 = vsel %vm392, %v671, 0
      %v695 = vsel %vm392, %v672, 0
      %697 = vmatpush.msra.mxu0 0.0
      %698 = vmatpush.msra.mxu0 0.0
      %699 = vmatpush.msra.mxu0 0.0
      %700 = vmatpush.msra.mxu0 0.0
      %701 = vmatpush.msra.mxu0 0.0
      %702 = vmatpush.msra.mxu0 0.0
      %703 = vmatpush.msra.mxu0 0.0
      %704 = vmatpush.msra.mxu0 0.0
      %705 = vmatpush.msra.mxu0 0.0
      %706 = vmatpush.msra.mxu0 0.0
      %707 = vmatpush.msra.mxu0 0.0
      %708 = vmatpush.msra.mxu0 0.0
      %709 = vmatpush.msra.mxu0 0.0
      %710 = vmatpush.msra.mxu0 0.0
      %711 = vmatpush.msra.mxu0 0.0
      %712 = vmatpush.msra.mxu0 %v689
      %713 = vmatmul.f32.gmra.mxu0 %v692
      %v714 = vpop.f32.mrf.mxu0
      %v715 = vadd.f32 0.0, %v714
      %716 = vmatmul.f32.gmra.mxu0 %v695
      %v717 = vpop.f32.mrf.mxu0
      %v718 = vadd.f32 0.0, %v717
      %719 = vdwg.mxu0
      %v720 = vadd.f32 %v601, %v715
      %v721 = vadd.f32 %v604, %v718
      %vm722 = vcmask 261312
      %v723 = vsel %vm722, %v390, -inf
      %724 = vmax.xlane.f32.xlu0 %v723
      %v725 = vpop.xlane.xlu0 %724
      %v726 = vsub.f32 %v390, %v725
      %v727 = vmul.f32 %v726, 1.442695
      %v728 = vpow.pop %v727
      %730 = vrot.lane.b32.xlu0 %v728, 104
      %v731 = vpop.permute.xlu0 %730
      %v733 = vsel %vm392, %v731, 0.0
      %734 = vadd.xlane.f32.xlu0 %v733
      %v735 = vpop.xlane.xlu0 %734
      %v736 = vrcp.pop %v735
      %v737 = vmul.f32 %v735, %v736
      %v738 = vsub.f32 1.0, %v737
      %v739 = vmul.f32 %v736, %v738
      %v740 = vadd.f32 %v736, %v739
      %vm741 = vweird.f32 %v735
      %vm742 = vweird.f32 %v736
      %vm743 = vmor %vm741, %vm742
      %v744 = vsel %vm743, %v736, %v740
      %v745 = vand.u32 2147483647, %v735
      %vm746 = vcmp.eq.f32.partialorder %v745, 8.507059e+37
      %v747 = vand.u32 %v735, 2147483648
      %v748 = vor.u32 1.1754944e-38, %v747
      %v749 = vsel %vm746, %v748, %v744
      %v750 = vmul.f32 %v728, %v749
      %751 = vset.pattern.permute.xlu0 3
      %752 = vperm.xlu0 %751, %v363
      %v753 = vpop.permute.xlu0 %752
      %v755 = vmul.f32 %v750, %v753
      %v756 = vsel %vm722, %v755, 0.0
      %v757 = vrot.slane %v756, 4
      %v758 = vadd.f32 %v756, %v757
      %v759 = vrot.slane %v758, 2
      %v760 = vadd.f32 %v758, %v759
      %v761 = vrot.slane %v760, 1
      %v762 = vadd.f32 %v760, %v761
      %764 = vrot.lane.b32.xlu0 %v762, 104
      %v765 = vpop.permute.xlu0 %764
      %v767 = vadd.f32 %v651, %v765
      %768 = vrot.lane.b32.xlu0 %v307, 80
      %v769 = vpop.permute.xlu0 %768
      %771 = vxpose.xlu0.b32.start [1/16] %v769, 128
      %772 = vxpose.xlu0.b32.cont [2/16] 0.0, 128
      %773 = vxpose.xlu0.b32.cont [3/16] 0.0, 128
      %774 = vxpose.xlu0.b32.cont [4/16] 0.0, 128
      %775 = vxpose.xlu0.b32.cont [5/16] 0.0, 128
      %776 = vxpose.xlu0.b32.cont [6/16] 0.0, 128
      %777 = vxpose.xlu0.b32.cont [7/16] 0.0, 128
      %778 = vxpose.xlu0.b32.cont [8/16] 0.0, 128
      %779 = vxpose.xlu0.b32.cont [9/16] 0.0, 128
      %780 = vxpose.xlu0.b32.cont [10/16] 0.0, 128
      %781 = vxpose.xlu0.b32.cont [11/16] 0.0, 128
      %782 = vxpose.xlu0.b32.cont [12/16] 0.0, 128
      %783 = vxpose.xlu0.b32.cont [13/16] 0.0, 128
      %784 = vxpose.xlu0.b32.cont [14/16] 0.0, 128
      %785 = vxpose.xlu0.b32.cont [15/16] 0.0, 128
      %786 = vxpose.xlu0.b32.end [16/16] 0.0, 128
      %v787 = vpop.trf.xlu0
      %v788 = vpop.trf.xlu0
      %v789 = vpop.trf.xlu0
      %v790 = vpop.trf.xlu0
      %v791 = vpop.trf.xlu0
      %v792 = vpop.trf.xlu0
      %v793 = vpop.trf.xlu0
      %v794 = vpop.trf.xlu0
      %v795 = vpop.trf.xlu0
      %v796 = vpop.trf.xlu0
      %v797 = vpop.trf.xlu0
      %v798 = vpop.trf.xlu0
      %v799 = vpop.trf.xlu0
      %v800 = vpop.trf.xlu0
      %v801 = vpop.trf.xlu0
      %v802 = vpop.trf.xlu0
      %804 = vrot.lane.b32.xlu0 %v755, 104
      %v805 = vpop.permute.xlu0 %804
      %v808 = vsel %vm392, %v787, 0
      %v811 = vsel %vm392, %v788, 0
      %813 = vmatpush.msra.mxu0 0.0
      %814 = vmatpush.msra.mxu0 0.0
      %815 = vmatpush.msra.mxu0 0.0
      %816 = vmatpush.msra.mxu0 0.0
      %817 = vmatpush.msra.mxu0 0.0
      %818 = vmatpush.msra.mxu0 0.0
      %819 = vmatpush.msra.mxu0 0.0
      %820 = vmatpush.msra.mxu0 0.0
      %821 = vmatpush.msra.mxu0 0.0
      %822 = vmatpush.msra.mxu0 0.0
      %823 = vmatpush.msra.mxu0 0.0
      %824 = vmatpush.msra.mxu0 0.0
      %825 = vmatpush.msra.mxu0 0.0
      %826 = vmatpush.msra.mxu0 0.0
      %827 = vmatpush.msra.mxu0 0.0
      %828 = vmatpush.msra.mxu0 %v805
      %829 = vmatmul.f32.gmra.mxu0 %v808
      %v830 = vpop.f32.mrf.mxu0
      %v831 = vadd.f32 0.0, %v830
      %832 = vmatmul.f32.gmra.mxu0 %v811
      %v833 = vpop.f32.mrf.mxu0
      %v834 = vadd.f32 0.0, %v833
      %835 = vdwg.mxu0
      %v836 = vadd.f32 %v720, %v831
      %v837 = vadd.f32 %v721, %v834
      %v838 = vld [vmem:[%s6] sm:$0xff]
      %v839 = vld [vmem:[%s6 + $0x8] sm:$0xff]
      %v840 = vperm.slane %v767, 0
      %v841 = vmul.f32 %v840, %v838
      %v842 = vmul.f32 %v840, %v839
      %v843 = vsub.f32 %v836, %v841
      %v844 = vsub.f32 %v837, %v842
      %v845 = vmul.f32 %v843, %v843
      %v846 = vmul.f32 %v844, %v844
      %v847 = vsel %vm392, %v845, 0.0
      %v848 = vsel %vm392, %v846, 0.0
      %v849 = vadd.f32 %v847, %v848
      %v850 = vrot.slane %v849, 4
      %v851 = vadd.f32 %v849, %v850
      %v852 = vrot.slane %v851, 2
      %v853 = vadd.f32 %v851, %v852
      %v854 = vrot.slane %v853, 1
      %v855 = vadd.f32 %v853, %v854
      %v856 = vrsqrt.pop %v855
      %v857 = vmul.f32 %v856, %v855
      %v858 = vmul.f32 %v857, %v856
      %v859 = vmul.f32 0.5, %v858
      %v860 = vsub.f32 1.5, %v859
      %v861 = vmul.f32 %v856, %v860
      %v862 = vmul.f32 %v855, %v861
      %vm863 = vcmp.eq.f32.partialorder %v855, inf
      %v864 = vsel %vm863, %v855, %v862
      %vm865 = vcmp.eq.f32.partialorder %v855, 0.0
      %v866 = vand.u32 %v855, 2147483648
      %v867 = vsel %vm865, %v866, %v864
      %v868 = vmax.f32 %v867, 1e-12
      %v869 = vrcp.pop %v868
      %v870 = vmul.f32 %v868, %v869
      %v871 = vsub.f32 1.0, %v870
      %v872 = vmul.f32 %v869, %v871
      %v873 = vadd.f32 %v869, %v872
      %vm874 = vweird.f32 %v868
      %vm875 = vweird.f32 %v869
      %vm876 = vmor %vm874, %vm875
      %v877 = vsel %vm876, %v869, %v873
      %v878 = vand.u32 2147483647, %v868
      %vm879 = vcmp.eq.f32.partialorder %v878, 8.507059e+37
      %v880 = vand.u32 %v868, 2147483648
      %v881 = vor.u32 1.1754944e-38, %v880
      %v882 = vsel %vm879, %v881, %v877
      %v883 = vmul.f32 %v843, %v882
      %v884 = vmul.f32 %v844, %v882
      %885 = vst.msk [vmem:[%s275] sm:$0xff] %vm392, %v883
      %886 = vst.msk [vmem:[%s275 + $0x8] sm:$0xff] %vm392, %v884
      %p887 = scmp.lt.s32.totalorder %s18, 1
      %s888 = scalar_select %p887, %s18, 1
      %s889 = smul.addr %s888, 2
      %s890 = smul.addr %s889, 8
      %s891 = scalar_lea.vmem %s7, %s890
      // Predicated region
      $region49: #{tpu_custom_call.1} parent=47 // pred_check
        %p892 = pneg %p188
      $region50: #{tpu_custom_call.1} parent=47 // pred_check_branch
        %894 = sbr.rel (%p892) target = $region52
      $region51: #{tpu_custom_call.1} parent=47 // pred_region
        _
      $region52: #{tpu_custom_call.1} parent=47 // pred_fallthru
        _
    $region48: #{tpu_custom_call.1} parent=5 // pred_fallthru
      _
    %p895 = scmp.le.s32.totalorder 2, %s13
    // Predicated region
    $region53: #{tpu_custom_call.1} parent=5 // pred_check
      %p896 = pneg %p895
    $region54: #{tpu_custom_call.1} parent=5 // pred_check_branch
      %898 = sbr.rel (%p896) target = $region56
    $region55: #{tpu_custom_call.1} parent=5 // pred_region
      %s899 = ssub.s32 %s13, 2
      // Predicated region
      $region57: #{tpu_custom_call.1} parent=55 // pred_check
        %p900 = pneg %p194
      $region58: #{tpu_custom_call.1} parent=55 // pred_check_branch
        %902 = sbr.rel (%p900) target = $region60
      $region59: #{tpu_custom_call.1} parent=55 // pred_region
        %p903 = scmp.lt.s32.totalorder %s19, 1
        %s904 = scalar_select %p903, %s19, 1
        %s905 = smul.addr %s904, 2
        %s906 = smul.addr %s905, 8
        %s907 = scalar_lea.vmem %s7, %s906
      $region60: #{tpu_custom_call.1} parent=55 // pred_fallthru
        _
    $region56: #{tpu_custom_call.1} parent=5 // pred_fallthru
      _
  $region6: #{tpu_custom_call.1} parent=0 // loop_footer
    %s17 = sadd.s32 1, %s13
  $region7: #{tpu_custom_call.1} parent=0 // loop_footer_branch
    %12 = sbr.rel target = $region3
  $region8: #{tpu_custom_call.1} parent=0 // loop_exit
    _

</llo_original>
